<compile_context>
chip_gen: v5e
topology: v5e:2x2
jax: 0.10.0
libtpu: 0.0.40
codegen_flags: <defaults>
</compile_context>

<pallas_src>
import functools

import numpy as np
import jax
import jax.numpy as jnp
from jax.experimental import pallas as pl
from jax.experimental.pallas import tpu as pltpu

TN = 512          # points per tile along the lane (N) axis
MIN_PAD = 2 * TN  # >= 2 grid steps so both v7x TensorCores get work


def _bucket(n):
    """Round n up to a power of two, floor MIN_PAD (stable call signatures)."""
    n = max(int(n), 1)
    return max(MIN_PAD, 1 << (n - 1).bit_length())


def _make_mlp_kernel(n_layers):
    """Fused pointwise-MLP kernel in (C, N) layout.

    Ref order: x_ref (c_in0, TN), then per layer wT_ref (c_out, c_in) and
    b_ref (c_out, 1), finally out_ref (c_out_last, TN).
    """

    def kernel(x_ref, *refs):
        out_ref = refs[-1]
        x = x_ref[...]                          # (c_in0, TN) f32
        w0 = refs[0][...]                       # (c0, c_in0)
        b0 = refs[1][...]                       # (c0, 1)
        c_in0 = x.shape[0]

        # Layer 0: contraction dim is tiny (1 or 4) -> VPU broadcast FMA
        # instead of a degenerate MXU matmul.
        h = w0[:, 0:1] * x[0:1, :]
        for k in range(1, c_in0):
            h = h + w0[:, k:k + 1] * x[k:k + 1, :]
        h = h + b0
        if n_layers > 1:
            h = jnp.maximum(h, 0.0)             # ReLU between layers only

        # Remaining layers: lane-dense MXU matmuls (weights pre-transposed).
        for i in range(1, n_layers):
            wT = refs[2 * i][...]               # (co, ci)
            b = refs[2 * i + 1][...]            # (co, 1)
            h = jnp.dot(wT, h, preferred_element_type=jnp.float32) + b
            if i < n_layers - 1:
                h = jnp.maximum(h, 0.0)

        out_ref[...] = h.astype(out_ref.dtype)

    return kernel


@functools.lru_cache(maxsize=None)
def _build_mlp_call(channels, n_pad):
    """Build (and cache) a jitted pallas_call for an MLP with `channels`."""
    n_layers = len(channels) - 1
    c_in, c_out = channels[0], channels[-1]

    in_specs = [pl.BlockSpec((c_in, TN), lambda i: (0, i))]
    for li in range(n_layers):
        ci, co = channels[li], channels[li + 1]
        in_specs.append(pl.BlockSpec((co, ci), lambda i: (0, 0)))  # W^T (resident)
        in_specs.append(pl.BlockSpec((co, 1), lambda i: (0, 0)))   # bias (resident)

    call = pl.pallas_call(
        _make_mlp_kernel(n_layers),
        out_shape=jax.ShapeDtypeStruct((c_out, n_pad), jnp.float32),
        grid=(n_pad // TN,),
        in_specs=in_specs,
        out_specs=pl.BlockSpec((c_out, TN), lambda i: (0, i)),
        compiler_params=pltpu.CompilerParams(
            dimension_semantics=("parallel",)),
    )
    return jax.jit(call)


def _init_mlp_params(channels, key, zero_last_bias=False):
    """Conv1d-style init; weights stored transposed as (C_out, C_in), bias (C_out, 1)."""
    flat = []
    for i in range(1, len(channels)):
        key, kw, kb = jax.random.split(key, 3)
        ci, co = channels[i - 1], channels[i]
        bound = 1.0 / np.sqrt(ci)
        w = jax.random.uniform(kw, (co, ci), jnp.float32, -bound, bound)
        b = jax.random.uniform(kb, (co, 1), jnp.float32, -bound, bound)
        if zero_last_bias and i == len(channels) - 1:
            b = jnp.zeros_like(b)               # nn.init.constant_(bias, 0.0)
        flat.extend([w, b])
    return flat


class EncoderPallas:
    """JAX/Pallas port of the PyTorch Encoder module."""

    def __init__(self, feature_dim, layers, key=None):
        if key is None:
            key = jax.random.PRNGKey(42)
        k1, k2 = jax.random.split(key)
        self.enc_channels = tuple([4] + list(layers) + [feature_dim])
        self.dist_channels = (1, feature_dim, feature_dim)
        self.enc_params = _init_mlp_params(self.enc_channels, k1, zero_last_bias=True)
        self.dist_params = _init_mlp_params(self.dist_channels, k2)
        self.feature_dim = feature_dim

    def _run_mlp(self, x_cn, channels, params):
        call = _build_mlp_call(channels, x_cn.shape[1])
        return call(x_cn, *params)              # (feature_dim, n_pad)

    def forward(self, inputs, dist, pos_history, goal_history, extras):
        # Single device->host sync per input tensor (hoisted out of the loop).
        inputs_np = np.asarray(inputs)[:, 1, :, :]           # (B, S, S)
        dist_np = np.asarray(dist)                            # (B, D, S, S)
        extras_np = np.asarray(extras)                        # (B, A, 2)
        pos_np = None if pos_history is None else np.asarray(pos_history)
        goal_np = None if goal_history is None else np.asarray(goal_history)

        B, sz, _ = inputs_np.shape
        scale_sub = sz // 2
        scale_div = sz * 0.7

        frontier_idxs, phistory_idxs, ghistory_idxs = [], [], []
        stream_cols, stream_meta = [], []       # (4, n) columns + (kind, b, n)
        dist_vecs = []

        def add_stream(kind, b, pts_n4):
            stream_meta.append((kind, b, pts_n4.shape[0]))
            stream_cols.append(np.ascontiguousarray(pts_n4.T))  # (4, n)

        for b in range(B):
            frontier = np.argwhere(inputs_np[b] != 0)          # (F, 2) row-major
            frontier_idxs.append(jnp.asarray(frontier, jnp.int32))

            mask = inputs_np[b] > 0
            # masked_select over (D, S, S) in row-major order.
            dist_vecs.append(dist_np[b][:, mask].reshape(-1).astype(np.float32))

            pts = np.zeros((frontier.shape[0], 4), np.float32)
            pts[:, :2] = (frontier.astype(np.float32) - scale_sub) / scale_div
            pts[:, 2] = 1.0
            add_stream("frontier", b, pts)

            if pos_np is not None:
                ppos = np.argwhere(pos_np[b] != 0)
                phistory_idxs.append(jnp.asarray(ppos, jnp.int32))
                pts = np.zeros((ppos.shape[0], 4), np.float32)
                pts[:, :2] = (ppos.astype(np.float32) - scale_sub) / scale_div
                pts[:, 3] = 1.0
                add_stream("phist", b, pts)

            if goal_np is not None:
                gpos = np.argwhere(goal_np[b] != 0)
                ghistory_idxs.append(jnp.asarray(gpos, jnp.int32))
                pts = np.zeros((gpos.shape[0], 4), np.float32)
                pts[:, :2] = (gpos.astype(np.float32) - scale_sub) / scale_div
                pts[:, 2] = 1.0
                add_stream("ghist", b, pts)

            pts = np.zeros((extras_np.shape[1], 4), np.float32)
            pts[:, :2] = (extras_np[b].astype(np.float32) - scale_sub) / scale_div
            pts[:, 3] = 1.0
            add_stream("agent", b, pts)

        # --- one padded (4, N) slab for every point stream -> one enc call ---
        total_pts = sum(m[2] for m in stream_meta)
        n_pad = _bucket(total_pts)
        enc_x = np.zeros((4, n_pad), np.float32)
        offsets = {}
        off = 0
        for (kind, b, n), cols in zip(stream_meta, stream_cols):
            if n > 0:
                enc_x[:, off:off + n] = cols
            offsets[(kind, b)] = (off, n)
            off += n

        # --- one padded (1, N) slab for the dist features -> one dist call ---
        total_dist = sum(v.shape[0] for v in dist_vecs)
        d_pad = _bucket(total_dist)
        dist_x = np.zeros((1, d_pad), np.float32)
        dist_offsets = []
        doff = 0
        for v in dist_vecs:
            n = v.shape[0]
            if n > 0:
                dist_x[0, doff:doff + n] = v
            dist_offsets.append((doff, n))
            doff += n

        enc_full = self._run_mlp(jnp.asarray(enc_x), self.enc_channels, self.enc_params)
        dist_full = self._run_mlp(jnp.asarray(dist_x), self.dist_channels, self.dist_params)

        def cut(full, off_n):
            o, n = off_n
            return full[None, :, o:o + n]       # (1, C_out, n) -- torch layout

        dist_out = [cut(dist_full, dist_offsets[b]) for b in range(B)]
        frontier_out = [cut(enc_full, offsets[("frontier", b)]) for b in range(B)]
        agent_out = [cut(enc_full, offsets[("agent", b)]) for b in range(B)]
        if pos_np is not None:
            phist_out = [cut(enc_full, offsets[("phist", b)])
                         if offsets[("phist", b)][1] > 0 else None for b in range(B)]
        else:
            phist_out = [None] * B
        if goal_np is not None:
            ghist_out = [cut(enc_full, offsets[("ghist", b)])
                         if offsets[("ghist", b)][1] > 0 else None for b in range(B)]
        else:
            ghist_out = [None] * B

        return (frontier_idxs,
                phistory_idxs if pos_np is not None else [None] * B,
                ghistory_idxs if goal_np is not None else [None] * B,
                dist_out, frontier_out, agent_out, phist_out, ghist_out)


if __name__ == "__main__":
    key = jax.random.PRNGKey(0)
    k1, k2, k3, k4, k5 = jax.random.split(key, 5)

    B, S, D, A = 2, 16, 2, 2
    feature_dim = 32
    layers = [32]

    inputs = (jax.random.uniform(k1, (B, 2, S, S)) > 0.85).astype(jnp.float32)
    inputs = inputs.at[:, 1, 0, 0].set(1.0)   # guarantee non-empty frontier
    dist = jax.random.uniform(k2, (B, D, S, S), jnp.float32)
    pos_history = (jax.random.uniform(k3, (B, S, S)) > 0.9).astype(jnp.float32)
    pos_history = pos_history.at[:, 1, 1].set(1.0)
    goal_history = (jax.random.uniform(k4, (B, S, S)) > 0.9).astype(jnp.float32)
    goal_history = goal_history.at[:, 2, 2].set(1.0)
    extras = jax.random.randint(k5, (B, A, 2), 0, S).astype(jnp.float32)

    enc = EncoderPallas(feature_dim, layers, key=jax.random.PRNGKey(42))
    outs = enc.forward(inputs, dist, pos_history, goal_history, extras)

    # block on every produced array
    for group in outs:
        for item in group:
            if item is not None:
                jax.block_until_ready(item)

    print("KERNEL_OK")
</pallas_src>

<mosaic_0001>
module attributes {stable_mosaic.version = 11 : i64} {
  func.func @kernel(%arg0: i32, %arg1: memref<4x512xf32, #tpu.memory_space<vmem>>, %arg2: memref<32x4xf32, #tpu.memory_space<vmem>>, %arg3: memref<32x1xf32, #tpu.memory_space<vmem>>, %arg4: memref<32x32xf32, #tpu.memory_space<vmem>>, %arg5: memref<32x1xf32, #tpu.memory_space<vmem>>, %arg6: memref<32x512xf32, #tpu.memory_space<vmem>>) attributes {dimension_semantics = [#tpu.dimension_semantics<parallel>], iteration_bounds = array<i64: 2>, scalar_prefetch = 0 : i64, scratch_operands = 0 : i64, tpu.core_type = #tpu.core_type<tc>, window_params = [{transform_indices = @transform_0, window_bounds = array<i64: 4, 512>}, {pipeline_mode = #tpu.pipeline_mode<synchronous>, transform_indices = @transform_1, window_bounds = array<i64: 32, 4>}, {pipeline_mode = #tpu.pipeline_mode<synchronous>, transform_indices = @transform_2, window_bounds = array<i64: 32, 1>}, {pipeline_mode = #tpu.pipeline_mode<synchronous>, transform_indices = @transform_3, window_bounds = array<i64: 32, 32>}, {pipeline_mode = #tpu.pipeline_mode<synchronous>, transform_indices = @transform_4, window_bounds = array<i64: 32, 1>}, {transform_indices = @transform_5, window_bounds = array<i64: 32, 512>}]} {
    %c0 = arith.constant 0 : index
    %c0_0 = arith.constant 0 : index
    %0 = vector.load %arg1[%c0, %c0_0] : memref<4x512xf32, #tpu.memory_space<vmem>>, vector<4x512xf32>
    %c0_1 = arith.constant 0 : index
    %c0_2 = arith.constant 0 : index
    %1 = vector.load %arg2[%c0_1, %c0_2] : memref<32x4xf32, #tpu.memory_space<vmem>>, vector<32x4xf32>
    %c0_3 = arith.constant 0 : index
    %c0_4 = arith.constant 0 : index
    %2 = vector.load %arg3[%c0_3, %c0_4] : memref<32x1xf32, #tpu.memory_space<vmem>>, vector<32x1xf32>
    %3 = vector.extract_strided_slice %1 {offsets = [0, 0], sizes = [32, 1], strides = [1, 1]} : vector<32x4xf32> to vector<32x1xf32>
    %4 = vector.extract_strided_slice %0 {offsets = [0, 0], sizes = [1, 512], strides = [1, 1]} : vector<4x512xf32> to vector<1x512xf32>
    %5 = vector.broadcast %3 : vector<32x1xf32> to vector<32x512xf32>
    %6 = vector.broadcast %4 : vector<1x512xf32> to vector<32x512xf32>
    %7 = arith.mulf %5, %6 : vector<32x512xf32>
    %8 = vector.extract_strided_slice %1 {offsets = [0, 1], sizes = [32, 1], strides = [1, 1]} : vector<32x4xf32> to vector<32x1xf32>
    %9 = vector.extract_strided_slice %0 {offsets = [1, 0], sizes = [1, 512], strides = [1, 1]} : vector<4x512xf32> to vector<1x512xf32>
    %10 = vector.broadcast %8 : vector<32x1xf32> to vector<32x512xf32>
    %11 = vector.broadcast %9 : vector<1x512xf32> to vector<32x512xf32>
    %12 = arith.mulf %10, %11 : vector<32x512xf32>
    %13 = arith.addf %7, %12 : vector<32x512xf32>
    %14 = vector.extract_strided_slice %1 {offsets = [0, 2], sizes = [32, 1], strides = [1, 1]} : vector<32x4xf32> to vector<32x1xf32>
    %15 = vector.extract_strided_slice %0 {offsets = [2, 0], sizes = [1, 512], strides = [1, 1]} : vector<4x512xf32> to vector<1x512xf32>
    %16 = vector.broadcast %14 : vector<32x1xf32> to vector<32x512xf32>
    %17 = vector.broadcast %15 : vector<1x512xf32> to vector<32x512xf32>
    %18 = arith.mulf %16, %17 : vector<32x512xf32>
    %19 = arith.addf %13, %18 : vector<32x512xf32>
    %20 = vector.extract_strided_slice %1 {offsets = [0, 3], sizes = [32, 1], strides = [1, 1]} : vector<32x4xf32> to vector<32x1xf32>
    %21 = vector.extract_strided_slice %0 {offsets = [3, 0], sizes = [1, 512], strides = [1, 1]} : vector<4x512xf32> to vector<1x512xf32>
    %22 = vector.broadcast %20 : vector<32x1xf32> to vector<32x512xf32>
    %23 = vector.broadcast %21 : vector<1x512xf32> to vector<32x512xf32>
    %24 = arith.mulf %22, %23 : vector<32x512xf32>
    %25 = arith.addf %19, %24 : vector<32x512xf32>
    %26 = vector.broadcast %2 : vector<32x1xf32> to vector<32x512xf32>
    %27 = arith.addf %25, %26 : vector<32x512xf32>
    %cst = arith.constant 0.000000e+00 : f32
    %28 = vector.broadcast %cst : f32 to vector<32x512xf32>
    %29 = arith.maximumf %27, %28 : vector<32x512xf32>
    %c0_5 = arith.constant 0 : index
    %c0_6 = arith.constant 0 : index
    %30 = vector.load %arg4[%c0_5, %c0_6] : memref<32x32xf32, #tpu.memory_space<vmem>>, vector<32x32xf32>
    %c0_7 = arith.constant 0 : index
    %c0_8 = arith.constant 0 : index
    %31 = vector.load %arg5[%c0_7, %c0_8] : memref<32x1xf32, #tpu.memory_space<vmem>>, vector<32x1xf32>
    %cst_9 = arith.constant dense<0.000000e+00> : vector<32x512xf32>
    %32 = tpu.matmul %30, %29, %cst_9 {dimension_numbers = #tpu.dot_dimension_numbers<[1], [0], [0], [1], [0, 0, 1, 1], [], []>} : vector<32x32xf32>, vector<32x512xf32>, vector<32x512xf32> -> vector<32x512xf32>
    %33 = vector.broadcast %31 : vector<32x1xf32> to vector<32x512xf32>
    %34 = arith.addf %32, %33 : vector<32x512xf32>
    %c0_10 = arith.constant 0 : index
    %c0_11 = arith.constant 0 : index
    %35 = vector.load %arg6[%c0_10, %c0_11] : memref<32x512xf32, #tpu.memory_space<vmem>>, vector<32x512xf32>
    tpu.vector_store %arg6[%c0_10, %c0_11], %34 {strides = array<i32>} : memref<32x512xf32, #tpu.memory_space<vmem>>, vector<32x512xf32>,
    return
  }
  func.func @transform_0(%arg0: i32) -> (i32, i32) {
    %c0_i32 = arith.constant 0 : i32
    %c0_i32_0 = arith.constant 0 : i32
    return %c0_i32, %arg0 : i32, i32
  }
  func.func @transform_1(%arg0: i32) -> (i32, i32) {
    %c0_i32 = arith.constant 0 : i32
    %c0_i32_0 = arith.constant 0 : i32
    %c0_i32_1 = arith.constant 0 : i32
    return %c0_i32, %c0_i32_0 : i32, i32
  }
  func.func @transform_2(%arg0: i32) -> (i32, i32) {
    %c0_i32 = arith.constant 0 : i32
    %c0_i32_0 = arith.constant 0 : i32
    %c0_i32_1 = arith.constant 0 : i32
    return %c0_i32, %c0_i32_0 : i32, i32
  }
  func.func @transform_3(%arg0: i32) -> (i32, i32) {
    %c0_i32 = arith.constant 0 : i32
    %c0_i32_0 = arith.constant 0 : i32
    %c0_i32_1 = arith.constant 0 : i32
    return %c0_i32, %c0_i32_0 : i32, i32
  }
  func.func @transform_4(%arg0: i32) -> (i32, i32) {
    %c0_i32 = arith.constant 0 : i32
    %c0_i32_0 = arith.constant 0 : i32
    %c0_i32_1 = arith.constant 0 : i32
    return %c0_i32, %c0_i32_0 : i32, i32
  }
  func.func @transform_5(%arg0: i32) -> (i32, i32) {
    %c0_i32 = arith.constant 0 : i32
    %c0_i32_0 = arith.constant 0 : i32
    return %c0_i32, %arg0 : i32, i32
  }
}

</mosaic_0001>

<llo_original>
// kernel: tpu_custom_call.1
$region0: #{tpu_custom_call.1}
  #allocation0 [shape = 'u32[]', space=smem, size = 0x4, offset = 0x4, fixed_abs, tag = 'smem constant byte address 0x4 - core index']
  #allocation1 [shape = 'u32[72,128]{1,0:T(1,128)}', space=vmem, size = 0x9000, scoped, tag = 'internal scratch']
  %s0 = inlined_call_operand.vmem [shape: f32[4,1024], index: 0, kind: input, shape index: {}]
  %s1 = inlined_call_operand.vmem [shape: f32[32,4], index: 1, kind: input, shape index: {}]
  %s2 = inlined_call_operand.vmem [shape: f32[32,1], index: 2, kind: input, shape index: {}]
  %s3 = inlined_call_operand.vmem [shape: f32[32,32], index: 3, kind: input, shape index: {}]
  %s4 = inlined_call_operand.vmem [shape: f32[32,1], index: 4, kind: input, shape index: {}]
  %s5 = inlined_call_operand.hbm [shape: f32[32,1024], index: 5, kind: output, shape index: {}]
  %s6 = sld [smem:[#allocation0]]
  $region53: #{tpu_custom_call.1} parent=0
    _
  %s8 = ssub.s32 1, %s6
  %s9 = scalar_select 0, %s8, %s6
  $region1: #{tpu_custom_call.1} parent=0
    #allocation2 [shape = 'u8[131072]{0}', space=vmem, size = 0x20000, scoped, tag = 'output window, operand 0']
    #allocation3 [shape = 's32[2]{0}', space=sflag, size = 0x8, scoped, tag = 'scoped memory for tpu_custom_call.1']
    %10 = vsyncpa [#allocation3], 0
    %s11 = scalar_lea.sflag [#allocation3], 1
    %12 = vsyncpa %s11, 0
    loop: start=0, step=1, limit=4
    $region2: #{tpu_custom_call.1} parent=1 // loop_pre_header
      _
    $region3: #{tpu_custom_call.1} parent=1 // loop_header
      %s14 = sphi 0, %s18
      %p15 = scmp.ge.s32.totalorder %s14, 4
      %s24 = sphi 0, %s26
      %s27 = sphi 0, %s24
      %s28 = sphi 0, %s27
      %s44 = sphi 0, %s28
      %s48 = sphi 0, %s48
      %s50 = sphi 0, %s48
      %s51 = sphi 0, %s50
      %s65 = sphi 0, %s51
      %s69 = sphi 0, %s69
      %s71 = sphi 0, %s69
      %s72 = sphi 0, %s71
      %s86 = sphi 0, %s72
      %s90 = sphi 0, %s90
      %s92 = sphi 0, %s90
      %s93 = sphi 0, %s92
      %s107 = sphi 0, %s93
      %s111 = sphi 0, %s111
      %s113 = sphi 0, %s111
      %s114 = sphi 0, %s113
      %s128 = sphi 0, %s114
      %s134 = sphi 0, %s136
      %s137 = sphi 0, %s134
      %s138 = sphi 0, %s137
      %s154 = sphi 0, %s138
    $region4: #{tpu_custom_call.1} parent=1 // loop_header_branch
      %17 = sbr.rel (%p15) target = $region8
    $region5: #{tpu_custom_call.1} parent=1 // loop_body
      %s19 = ssub.s32 %s14, 1
      %s20 = ssub.s32 %s14, 2
      %s21 = sadd.s32 %s14, 1
      %s22 = ssub.s32 %s14, %s21
      %p23 = scmp.eq.s32.totalorder %s22, 0
      %s25 = sadd.s32 %s24, 1
      %s26 = scalar_select %p23, %s24, %s25
      %p29 = pneg %p23
      %p30 = scmp.eq.s32.totalorder %s14, 1
      %p31 = por %p29, %p30
      %p32 = scmp.ne.s32.totalorder %s24, %s27
      %p33 = scmp.eq.s32.totalorder %s14, 0
      %p34 = por %p32, %p33
      %p35 = scmp.ne.s32.totalorder %s24, %s27
      %p36 = scmp.eq.s32.totalorder %s19, 1
      %p37 = por %p35, %p36
      %p38 = scmp.ne.s32.totalorder %s27, %s28
      %p39 = scmp.eq.s32.totalorder %s19, 0
      %p40 = por %p38, %p39
      %p41 = scmp.ne.s32.totalorder %s27, %s28
      %p42 = scmp.eq.s32.totalorder %s20, 1
      %p43 = por %p41, %p42
      %p45 = scmp.ne.s32.totalorder %s28, %s44
      %p46 = scmp.eq.s32.totalorder %s20, 0
      %p47 = por %p45, %p46
      %s49 = sadd.s32 %s48, 1
      %p52 = scmp.eq.s32.totalorder %s14, 1
      %p53 = scmp.ne.s32.totalorder %s48, %s50
      %p54 = scmp.eq.s32.totalorder %s14, 0
      %p55 = por %p53, %p54
      %p56 = scmp.ne.s32.totalorder %s48, %s50
      %p57 = scmp.eq.s32.totalorder %s19, 1
      %p58 = por %p56, %p57
      %p59 = scmp.ne.s32.totalorder %s50, %s51
      %p60 = scmp.eq.s32.totalorder %s19, 0
      %p61 = por %p59, %p60
      %p62 = scmp.ne.s32.totalorder %s50, %s51
      %p63 = scmp.eq.s32.totalorder %s20, 1
      %p64 = por %p62, %p63
      %p66 = scmp.ne.s32.totalorder %s51, %s65
      %p67 = scmp.eq.s32.totalorder %s20, 0
      %p68 = por %p66, %p67
      %s70 = sadd.s32 %s69, 1
      %p73 = scmp.eq.s32.totalorder %s14, 1
      %p74 = scmp.ne.s32.totalorder %s69, %s71
      %p75 = scmp.eq.s32.totalorder %s14, 0
      %p76 = por %p74, %p75
      %p77 = scmp.ne.s32.totalorder %s69, %s71
      %p78 = scmp.eq.s32.totalorder %s19, 1
      %p79 = por %p77, %p78
      %p80 = scmp.ne.s32.totalorder %s71, %s72
      %p81 = scmp.eq.s32.totalorder %s19, 0
      %p82 = por %p80, %p81
      %p83 = scmp.ne.s32.totalorder %s71, %s72
      %p84 = scmp.eq.s32.totalorder %s20, 1
      %p85 = por %p83, %p84
      %p87 = scmp.ne.s32.totalorder %s72, %s86
      %p88 = scmp.eq.s32.totalorder %s20, 0
      %p89 = por %p87, %p88
      %s91 = sadd.s32 %s90, 1
      %p94 = scmp.eq.s32.totalorder %s14, 1
      %p95 = scmp.ne.s32.totalorder %s90, %s92
      %p96 = scmp.eq.s32.totalorder %s14, 0
      %p97 = por %p95, %p96
      %p98 = scmp.ne.s32.totalorder %s90, %s92
      %p99 = scmp.eq.s32.totalorder %s19, 1
      %p100 = por %p98, %p99
      %p101 = scmp.ne.s32.totalorder %s92, %s93
      %p102 = scmp.eq.s32.totalorder %s19, 0
      %p103 = por %p101, %p102
      %p104 = scmp.ne.s32.totalorder %s92, %s93
      %p105 = scmp.eq.s32.totalorder %s20, 1
      %p106 = por %p104, %p105
      %p108 = scmp.ne.s32.totalorder %s93, %s107
      %p109 = scmp.eq.s32.totalorder %s20, 0
      %p110 = por %p108, %p109
      %s112 = sadd.s32 %s111, 1
      %p115 = scmp.eq.s32.totalorder %s14, 1
      %p116 = scmp.ne.s32.totalorder %s111, %s113
      %p117 = scmp.eq.s32.totalorder %s14, 0
      %p118 = por %p116, %p117
      %p119 = scmp.ne.s32.totalorder %s111, %s113
      %p120 = scmp.eq.s32.totalorder %s19, 1
      %p121 = por %p119, %p120
      %p122 = scmp.ne.s32.totalorder %s113, %s114
      %p123 = scmp.eq.s32.totalorder %s19, 0
      %p124 = por %p122, %p123
      %p125 = scmp.ne.s32.totalorder %s113, %s114
      %p126 = scmp.eq.s32.totalorder %s20, 1
      %p127 = por %p125, %p126
      %p129 = scmp.ne.s32.totalorder %s114, %s128
      %p130 = scmp.eq.s32.totalorder %s20, 0
      %p131 = por %p129, %p130
      %s132 = ssub.s32 %s14, %s21
      %p133 = scmp.eq.s32.totalorder %s132, 0
      %s135 = sadd.s32 %s134, 1
      %s136 = scalar_select %p133, %s134, %s135
      %p139 = pneg %p133
      %p140 = scmp.eq.s32.totalorder %s14, 1
      %p141 = por %p139, %p140
      %p142 = scmp.ne.s32.totalorder %s134, %s137
      %p143 = scmp.eq.s32.totalorder %s14, 0
      %p144 = por %p142, %p143
      %p145 = scmp.ne.s32.totalorder %s134, %s137
      %p146 = scmp.eq.s32.totalorder %s19, 1
      %p147 = por %p145, %p146
      %p148 = scmp.ne.s32.totalorder %s137, %s138
      %p149 = scmp.eq.s32.totalorder %s19, 0
      %p150 = por %p148, %p149
      %p151 = scmp.ne.s32.totalorder %s137, %s138
      %p152 = scmp.eq.s32.totalorder %s20, 1
      %p153 = por %p151, %p152
      %p155 = scmp.ne.s32.totalorder %s138, %s154
      %p156 = scmp.eq.s32.totalorder %s20, 0
      %p157 = por %p155, %p156
      %p158 = scmp.le.s32.totalorder 1, %s14
      %p159 = scmp.lt.s32.totalorder %s14, 3
      %p160 = pnand %p158, %p159
      %p161 = pneg %p160
      // Predicated region
      $region9: #{tpu_custom_call.1} parent=5 // pred_check
        _
      $region10: #{tpu_custom_call.1} parent=5 // pred_check_branch
        %163 = sbr.rel (%p160) target = $region12
      $region11: #{tpu_custom_call.1} parent=5 // pred_region
        %s164 = ssub.s32 %s14, 1
        // Predicated region
        $region13: #{tpu_custom_call.1} parent=11 // pred_check
          %p165 = pneg %p61
        $region14: #{tpu_custom_call.1} parent=11 // pred_check_branch
          %167 = sbr.rel (%p165) target = $region16
        $region15: #{tpu_custom_call.1} parent=11 // pred_region
          _
        $region16: #{tpu_custom_call.1} parent=11 // pred_fallthru
          _
        // Predicated region
        $region17: #{tpu_custom_call.1} parent=11 // pred_check
          %p168 = pneg %p82
        $region18: #{tpu_custom_call.1} parent=11 // pred_check_branch
          %170 = sbr.rel (%p168) target = $region20
        $region19: #{tpu_custom_call.1} parent=11 // pred_region
          _
        $region20: #{tpu_custom_call.1} parent=11 // pred_fallthru
          _
        // Predicated region
        $region21: #{tpu_custom_call.1} parent=11 // pred_check
          %p171 = pneg %p103
        $region22: #{tpu_custom_call.1} parent=11 // pred_check_branch
          %173 = sbr.rel (%p171) target = $region24
        $region23: #{tpu_custom_call.1} parent=11 // pred_region
          _
        $region24: #{tpu_custom_call.1} parent=11 // pred_fallthru
          _
        // Predicated region
        $region25: #{tpu_custom_call.1} parent=11 // pred_check
          %p174 = pneg %p124
        $region26: #{tpu_custom_call.1} parent=11 // pred_check_branch
          %176 = sbr.rel (%p174) target = $region28
        $region27: #{tpu_custom_call.1} parent=11 // pred_region
          _
        $region28: #{tpu_custom_call.1} parent=11 // pred_fallthru
          _
      $region12: #{tpu_custom_call.1} parent=5 // pred_fallthru
        _
      %p177 = scmp.lt.s32.totalorder %s14, 2
      // Predicated region
      $region29: #{tpu_custom_call.1} parent=5 // pred_check
        %p178 = pneg %p177
      $region30: #{tpu_custom_call.1} parent=5 // pred_check_branch
        %180 = sbr.rel (%p178) target = $region32
      $region31: #{tpu_custom_call.1} parent=5 // pred_region
        // Predicated region
        $region33: #{tpu_custom_call.1} parent=31 // pred_check
          %p181 = pneg %p34
        $region34: #{tpu_custom_call.1} parent=31 // pred_check_branch
          %183 = sbr.rel (%p181) target = $region36
        $region35: #{tpu_custom_call.1} parent=31 // pred_region
          %s184 = smul.u32 4, %s14
          %p185 = scmp.lt.s32.totalorder %s184, 7
          %s186 = scalar_select %p185, %s184, 7
          %s187 = smul.addr %s186, 4
          %s188 = scalar_lea.vmem %s0, %s187
          %s189 = smul.u32 4, %s14
        $region36: #{tpu_custom_call.1} parent=31 // pred_fallthru
          _
      $region32: #{tpu_custom_call.1} parent=5 // pred_fallthru
        _
      %p190 = scmp.le.s32.totalorder 1, %s14
      %p191 = scmp.lt.s32.totalorder %s14, 3
      %p192 = pnand %p190, %p191
      %p193 = pneg %p192
      // Predicated region
      $region37: #{tpu_custom_call.1} parent=5 // pred_check
        _
      $region38: #{tpu_custom_call.1} parent=5 // pred_check_branch
        %195 = sbr.rel (%p192) target = $region40
      $region39: #{tpu_custom_call.1} parent=5 // pred_region
        %s196 = ssub.s32 %s14, 1
        %s197 = smul.u32 4, %s19
        %p198 = scmp.lt.s32.totalorder %s197, 7
        %s199 = scalar_select %p198, %s197, 7
        %s200 = smul.addr %s199, 4
        %s201 = scalar_lea.vmem %s0, %s200
        %p202 = pneg %p40
        %p203 = pneg %p37
        %p204 = pneg %p61
        %p205 = pneg %p58
        %p206 = pneg %p82
        %p207 = pneg %p79
        %p208 = pneg %p103
        %p209 = pneg %p100
        %p210 = pneg %p124
        %p211 = pneg %p121
        %p212 = pneg %p150
        %p213 = pneg %p147
        %s214 = sand.u32 %s137, 1
        %s215 = scalar_lea.sflag [#allocation3], %s214
        %s216 = sand.u32 %s137, 1
        %s217 = smul.addr %s216, 128
        %s218 = scalar_lea.vmem [#allocation2], %s217
        %s219 = smul.u32 4, %s19
        %p220 = scmp.lt.s32.totalorder %s219, 7
        %s221 = scalar_select %p220, %s219, 7
        %s222 = smul.addr %s221, 4
        %s223 = scalar_lea.vmem %s0, %s222
        %s224 = smul.u32 4, %s19
        %s225 = smul.u32 4, %s19
        %v226 = vld [vmem:[%s223] sm:$0xff]
        %v227 = vld [vmem:[%s223 + $0x8] sm:$0xff]
        %v228 = vld [vmem:[%s1] sm:$0xff]
        %v229 = vld [vmem:[%s1 + $0x8] sm:$0xff]
        %v230 = vld [vmem:[%s1 + $0x10] sm:$0xff]
        %v231 = vld [vmem:[%s1 + $0x18] sm:$0xff]
        %v232 = vld [vmem:[%s2] sm:$0xff]
        %v233 = vld [vmem:[%s2 + $0x8] sm:$0xff]
        %v234 = vld [vmem:[%s2 + $0x10] sm:$0xff]
        %v235 = vld [vmem:[%s2 + $0x18] sm:$0xff]
        %237 = vset.pattern.permute.xlu0 0
        %238 = vperm.xlu0 %237, %v228
        %v239 = vpop.permute.xlu0 %238
        %242 = vset.pattern.permute.xlu0 0
        %243 = vperm.xlu0 %242, %v229
        %v244 = vpop.permute.xlu0 %243
        %247 = vset.pattern.permute.xlu0 0
        %248 = vperm.xlu0 %247, %v230
        %v249 = vpop.permute.xlu0 %248
        %252 = vset.pattern.permute.xlu0 0
        %253 = vperm.xlu0 %252, %v231
        %v254 = vpop.permute.xlu0 %253
        %v258 = vperm.slane %v226, 0
        %v259 = vperm.slane %v226, 4
        %v260 = vperm.slane %v227, 0
        %v261 = vperm.slane %v227, 4
        %v266 = vperm.slane %v258, 0
        %v267 = vperm.slane %v259, 0
        %v268 = vperm.slane %v260, 0
        %v269 = vperm.slane %v261, 0
        %v270 = vmul.f32 %v239, %v266
        %v271 = vmul.f32 %v239, %v267
        %v272 = vmul.f32 %v239, %v268
        %v273 = vmul.f32 %v239, %v269
        %v274 = vmul.f32 %v244, %v266
        %v275 = vmul.f32 %v244, %v267
        %v276 = vmul.f32 %v244, %v268
        %v277 = vmul.f32 %v244, %v269
        %v278 = vmul.f32 %v249, %v266
        %v279 = vmul.f32 %v249, %v267
        %v280 = vmul.f32 %v249, %v268
        %v281 = vmul.f32 %v249, %v269
        %v282 = vmul.f32 %v254, %v266
        %v283 = vmul.f32 %v254, %v267
        %v284 = vmul.f32 %v254, %v268
        %v285 = vmul.f32 %v254, %v269
        %286 = vset.pattern.permute.xlu0 1
        %287 = vperm.xlu0 %286, %v228
        %v288 = vpop.permute.xlu0 %287
        %290 = vset.pattern.permute.xlu0 1
        %291 = vperm.xlu0 %290, %v229
        %v292 = vpop.permute.xlu0 %291
        %294 = vset.pattern.permute.xlu0 1
        %295 = vperm.xlu0 %294, %v230
        %v296 = vpop.permute.xlu0 %295
        %298 = vset.pattern.permute.xlu0 1
        %299 = vperm.xlu0 %298, %v231
        %v300 = vpop.permute.xlu0 %299
        %v302 = vperm.slane %v226, 1
        %v303 = vperm.slane %v226, 5
        %v304 = vperm.slane %v227, 1
        %v305 = vperm.slane %v227, 5
        %v310 = vperm.slane %v302, 1
        %v311 = vperm.slane %v303, 1
        %v312 = vperm.slane %v304, 1
        %v313 = vperm.slane %v305, 1
        %v314 = vmul.f32 %v288, %v310
        %v315 = vmul.f32 %v288, %v311
        %v316 = vmul.f32 %v288, %v312
        %v317 = vmul.f32 %v288, %v313
        %v318 = vmul.f32 %v292, %v310
        %v319 = vmul.f32 %v292, %v311
        %v320 = vmul.f32 %v292, %v312
        %v321 = vmul.f32 %v292, %v313
        %v322 = vmul.f32 %v296, %v310
        %v323 = vmul.f32 %v296, %v311
        %v324 = vmul.f32 %v296, %v312
        %v325 = vmul.f32 %v296, %v313
        %v326 = vmul.f32 %v300, %v310
        %v327 = vmul.f32 %v300, %v311
        %v328 = vmul.f32 %v300, %v312
        %v329 = vmul.f32 %v300, %v313
        %v330 = vadd.f32 %v270, %v314
        %v331 = vadd.f32 %v271, %v315
        %v332 = vadd.f32 %v272, %v316
        %v333 = vadd.f32 %v273, %v317
        %v334 = vadd.f32 %v274, %v318
        %v335 = vadd.f32 %v275, %v319
        %v336 = vadd.f32 %v276, %v320
        %v337 = vadd.f32 %v277, %v321
        %v338 = vadd.f32 %v278, %v322
        %v339 = vadd.f32 %v279, %v323
        %v340 = vadd.f32 %v280, %v324
        %v341 = vadd.f32 %v281, %v325
        %v342 = vadd.f32 %v282, %v326
        %v343 = vadd.f32 %v283, %v327
        %v344 = vadd.f32 %v284, %v328
        %v345 = vadd.f32 %v285, %v329
        %346 = vset.pattern.permute.xlu0 2
        %347 = vperm.xlu0 %346, %v228
        %v348 = vpop.permute.xlu0 %347
        %350 = vset.pattern.permute.xlu0 2
        %351 = vperm.xlu0 %350, %v229
        %v352 = vpop.permute.xlu0 %351
        %354 = vset.pattern.permute.xlu0 2
        %355 = vperm.xlu0 %354, %v230
        %v356 = vpop.permute.xlu0 %355
        %358 = vset.pattern.permute.xlu0 2
        %359 = vperm.xlu0 %358, %v231
        %v360 = vpop.permute.xlu0 %359
        %v362 = vperm.slane %v226, 2
        %v363 = vperm.slane %v226, 6
        %v364 = vperm.slane %v227, 2
        %v365 = vperm.slane %v227, 6
        %v370 = vperm.slane %v362, 2
        %v371 = vperm.slane %v363, 2
        %v372 = vperm.slane %v364, 2
        %v373 = vperm.slane %v365, 2
        %v374 = vmul.f32 %v348, %v370
        %v375 = vmul.f32 %v348, %v371
        %v376 = vmul.f32 %v348, %v372
        %v377 = vmul.f32 %v348, %v373
        %v378 = vmul.f32 %v352, %v370
        %v379 = vmul.f32 %v352, %v371
        %v380 = vmul.f32 %v352, %v372
        %v381 = vmul.f32 %v352, %v373
        %v382 = vmul.f32 %v356, %v370
        %v383 = vmul.f32 %v356, %v371
        %v384 = vmul.f32 %v356, %v372
        %v385 = vmul.f32 %v356, %v373
        %v386 = vmul.f32 %v360, %v370
        %v387 = vmul.f32 %v360, %v371
        %v388 = vmul.f32 %v360, %v372
        %v389 = vmul.f32 %v360, %v373
        %v390 = vadd.f32 %v330, %v374
        %v391 = vadd.f32 %v331, %v375
        %v392 = vadd.f32 %v332, %v376
        %v393 = vadd.f32 %v333, %v377
        %v394 = vadd.f32 %v334, %v378
        %v395 = vadd.f32 %v335, %v379
        %v396 = vadd.f32 %v336, %v380
        %v397 = vadd.f32 %v337, %v381
        %v398 = vadd.f32 %v338, %v382
        %v399 = vadd.f32 %v339, %v383
        %v400 = vadd.f32 %v340, %v384
        %v401 = vadd.f32 %v341, %v385
        %v402 = vadd.f32 %v342, %v386
        %v403 = vadd.f32 %v343, %v387
        %v404 = vadd.f32 %v344, %v388
        %v405 = vadd.f32 %v345, %v389
        %406 = vset.pattern.permute.xlu0 3
        %407 = vperm.xlu0 %406, %v228
        %v408 = vpop.permute.xlu0 %407
        %410 = vset.pattern.permute.xlu0 3
        %411 = vperm.xlu0 %410, %v229
        %v412 = vpop.permute.xlu0 %411
        %414 = vset.pattern.permute.xlu0 3
        %415 = vperm.xlu0 %414, %v230
        %v416 = vpop.permute.xlu0 %415
        %418 = vset.pattern.permute.xlu0 3
        %419 = vperm.xlu0 %418, %v231
        %v420 = vpop.permute.xlu0 %419
        %v422 = vperm.slane %v226, 3
        %v423 = vperm.slane %v226, 7
        %v424 = vperm.slane %v227, 3
        %v425 = vperm.slane %v227, 7
        %v430 = vperm.slane %v422, 3
        %v431 = vperm.slane %v423, 3
        %v432 = vperm.slane %v424, 3
        %v433 = vperm.slane %v425, 3
        %v434 = vmul.f32 %v408, %v430
        %v435 = vmul.f32 %v408, %v431
        %v436 = vmul.f32 %v408, %v432
        %v437 = vmul.f32 %v408, %v433
        %v438 = vmul.f32 %v412, %v430
        %v439 = vmul.f32 %v412, %v431
        %v440 = vmul.f32 %v412, %v432
        %v441 = vmul.f32 %v412, %v433
        %v442 = vmul.f32 %v416, %v430
        %v443 = vmul.f32 %v416, %v431
        %v444 = vmul.f32 %v416, %v432
        %v445 = vmul.f32 %v416, %v433
        %v446 = vmul.f32 %v420, %v430
        %v447 = vmul.f32 %v420, %v431
        %v448 = vmul.f32 %v420, %v432
        %v449 = vmul.f32 %v420, %v433
        %v450 = vadd.f32 %v390, %v434
        %v451 = vadd.f32 %v391, %v435
        %v452 = vadd.f32 %v392, %v436
        %v453 = vadd.f32 %v393, %v437
        %v454 = vadd.f32 %v394, %v438
        %v455 = vadd.f32 %v395, %v439
        %v456 = vadd.f32 %v396, %v440
        %v457 = vadd.f32 %v397, %v441
        %v458 = vadd.f32 %v398, %v442
        %v459 = vadd.f32 %v399, %v443
        %v460 = vadd.f32 %v400, %v444
        %v461 = vadd.f32 %v401, %v445
        %v462 = vadd.f32 %v402, %v446
        %v463 = vadd.f32 %v403, %v447
        %v464 = vadd.f32 %v404, %v448
        %v465 = vadd.f32 %v405, %v449
        %467 = vset.pattern.permute.xlu0 0
        %468 = vperm.xlu0 %467, %v232
        %v469 = vpop.permute.xlu0 %468
        %472 = vset.pattern.permute.xlu0 0
        %473 = vperm.xlu0 %472, %v233
        %v474 = vpop.permute.xlu0 %473
        %477 = vset.pattern.permute.xlu0 0
        %478 = vperm.xlu0 %477, %v234
        %v479 = vpop.permute.xlu0 %478
        %482 = vset.pattern.permute.xlu0 0
        %483 = vperm.xlu0 %482, %v235
        %v484 = vpop.permute.xlu0 %483
        %v486 = vadd.f32 %v450, %v469
        %v487 = vadd.f32 %v451, %v469
        %v488 = vadd.f32 %v452, %v469
        %v489 = vadd.f32 %v453, %v469
        %v490 = vadd.f32 %v454, %v474
        %v491 = vadd.f32 %v455, %v474
        %v492 = vadd.f32 %v456, %v474
        %v493 = vadd.f32 %v457, %v474
        %v494 = vadd.f32 %v458, %v479
        %v495 = vadd.f32 %v459, %v479
        %v496 = vadd.f32 %v460, %v479
        %v497 = vadd.f32 %v461, %v479
        %v498 = vadd.f32 %v462, %v484
        %v499 = vadd.f32 %v463, %v484
        %v500 = vadd.f32 %v464, %v484
        %v501 = vadd.f32 %v465, %v484
        %v502 = vmax.f32 %v486, 0.0
        %v503 = vmax.f32 %v487, 0.0
        %v504 = vmax.f32 %v488, 0.0
        %v505 = vmax.f32 %v489, 0.0
        %v506 = vmax.f32 %v490, 0.0
        %v507 = vmax.f32 %v491, 0.0
        %v508 = vmax.f32 %v492, 0.0
        %v509 = vmax.f32 %v493, 0.0
        %v510 = vmax.f32 %v494, 0.0
        %v511 = vmax.f32 %v495, 0.0
        %v512 = vmax.f32 %v496, 0.0
        %v513 = vmax.f32 %v497, 0.0
        %v514 = vmax.f32 %v498, 0.0
        %v515 = vmax.f32 %v499, 0.0
        %v516 = vmax.f32 %v500, 0.0
        %v517 = vmax.f32 %v501, 0.0
        %v518 = vld [vmem:[%s3] sm:$0xff]
        %v519 = vld [vmem:[%s3 + $0x8] sm:$0xff]
        %v520 = vld [vmem:[%s3 + $0x10] sm:$0xff]
        %v521 = vld [vmem:[%s3 + $0x18] sm:$0xff]
        %v522 = vld [vmem:[%s4] sm:$0xff]
        %v523 = vld [vmem:[%s4 + $0x8] sm:$0xff]
        %v524 = vld [vmem:[%s4 + $0x10] sm:$0xff]
        %v525 = vld [vmem:[%s4 + $0x18] sm:$0xff]
        %527 = vset.pattern.permute.xlu0 0
        %528 = vperm.xlu0 %527, %v522
        %v529 = vpop.permute.xlu0 %528
        %532 = vset.pattern.permute.xlu0 0
        %533 = vperm.xlu0 %532, %v523
        %v534 = vpop.permute.xlu0 %533
        %537 = vset.pattern.permute.xlu0 0
        %538 = vperm.xlu0 %537, %v524
        %v539 = vpop.permute.xlu0 %538
        %542 = vset.pattern.permute.xlu0 0
        %543 = vperm.xlu0 %542, %v525
        %v544 = vpop.permute.xlu0 %543
        %vm546 = vcmask 261120
        %v548 = vsel %vm546, %v518, 0
        %v551 = vsel %vm546, %v519, 0
        %v554 = vsel %vm546, %v520, 0
        %v557 = vsel %vm546, %v521, 0
        %559 = vmatpush.msra.mxu0 0.0
        %560 = vmatpush.msra.mxu0 0.0
        %561 = vmatpush.msra.mxu0 0.0
        %562 = vmatpush.msra.mxu0 0.0
        %563 = vmatpush.msra.mxu0 0.0
        %564 = vmatpush.msra.mxu0 0.0
        %565 = vmatpush.msra.mxu0 0.0
        %566 = vmatpush.msra.mxu0 0.0
        %567 = vmatpush.msra.mxu0 0.0
        %568 = vmatpush.msra.mxu0 0.0
        %569 = vmatpush.msra.mxu0 0.0
        %570 = vmatpush.msra.mxu0 0.0
        %571 = vmatpush.msra.mxu0 %v514
        %572 = vmatpush.msra.mxu0 %v510
        %573 = vmatpush.msra.mxu0 %v506
        %574 = vmatpush.msra.mxu0 %v502
        %575 = vmatmul.f32.gmra.mxu0 %v548
        %v576 = vpop.f32.mrf.mxu0
        %v577 = vadd.f32 %v529, %v576
        %578 = vmatmul.f32.gmra.mxu0 %v551
        %v579 = vpop.f32.mrf.mxu0
        %v580 = vadd.f32 %v534, %v579
        %581 = vmatmul.f32.gmra.mxu0 %v554
        %v582 = vpop.f32.mrf.mxu0
        %v583 = vadd.f32 %v539, %v582
        %584 = vmatmul.f32.gmra.mxu0 %v557
        %v585 = vpop.f32.mrf.mxu0
        %v586 = vadd.f32 %v544, %v585
        %587 = vdwg.mxu0
        %588 = vmatpush.msra.mxu0 0.0
        %589 = vmatpush.msra.mxu0 0.0
        %590 = vmatpush.msra.mxu0 0.0
        %591 = vmatpush.msra.mxu0 0.0
        %592 = vmatpush.msra.mxu0 0.0
        %593 = vmatpush.msra.mxu0 0.0
        %594 = vmatpush.msra.mxu0 0.0
        %595 = vmatpush.msra.mxu0 0.0
        %596 = vmatpush.msra.mxu0 0.0
        %597 = vmatpush.msra.mxu0 0.0
        %598 = vmatpush.msra.mxu0 0.0
        %599 = vmatpush.msra.mxu0 0.0
        %600 = vmatpush.msra.mxu0 %v515
        %601 = vmatpush.msra.mxu0 %v511
        %602 = vmatpush.msra.mxu0 %v507
        %603 = vmatpush.msra.mxu0 %v503
        %604 = vmatmul.f32.gmra.mxu0 %v548
        %v605 = vpop.f32.mrf.mxu0
        %v606 = vadd.f32 %v529, %v605
        %607 = vmatmul.f32.gmra.mxu0 %v551
        %v608 = vpop.f32.mrf.mxu0
        %v609 = vadd.f32 %v534, %v608
        %610 = vmatmul.f32.gmra.mxu0 %v554
        %v611 = vpop.f32.mrf.mxu0
        %v612 = vadd.f32 %v539, %v611
        %613 = vmatmul.f32.gmra.mxu0 %v557
        %v614 = vpop.f32.mrf.mxu0
        %v615 = vadd.f32 %v544, %v614
        %616 = vdwg.mxu0
        %617 = vmatpush.msra.mxu0 0.0
        %618 = vmatpush.msra.mxu0 0.0
        %619 = vmatpush.msra.mxu0 0.0
        %620 = vmatpush.msra.mxu0 0.0
        %621 = vmatpush.msra.mxu0 0.0
        %622 = vmatpush.msra.mxu0 0.0
        %623 = vmatpush.msra.mxu0 0.0
        %624 = vmatpush.msra.mxu0 0.0
        %625 = vmatpush.msra.mxu0 0.0
        %626 = vmatpush.msra.mxu0 0.0
        %627 = vmatpush.msra.mxu0 0.0
        %628 = vmatpush.msra.mxu0 0.0
        %629 = vmatpush.msra.mxu0 %v516
        %630 = vmatpush.msra.mxu0 %v512
        %631 = vmatpush.msra.mxu0 %v508
        %632 = vmatpush.msra.mxu0 %v504
        %633 = vmatmul.f32.gmra.mxu0 %v548
        %v634 = vpop.f32.mrf.mxu0
        %v635 = vadd.f32 %v529, %v634
        %636 = vmatmul.f32.gmra.mxu0 %v551
        %v637 = vpop.f32.mrf.mxu0
        %v638 = vadd.f32 %v534, %v637
        %639 = vmatmul.f32.gmra.mxu0 %v554
        %v640 = vpop.f32.mrf.mxu0
        %v641 = vadd.f32 %v539, %v640
        %642 = vmatmul.f32.gmra.mxu0 %v557
        %v643 = vpop.f32.mrf.mxu0
        %v644 = vadd.f32 %v544, %v643
        %645 = vdwg.mxu0
        %646 = vmatpush.msra.mxu0 0.0
        %647 = vmatpush.msra.mxu0 0.0
        %648 = vmatpush.msra.mxu0 0.0
        %649 = vmatpush.msra.mxu0 0.0
        %650 = vmatpush.msra.mxu0 0.0
        %651 = vmatpush.msra.mxu0 0.0
        %652 = vmatpush.msra.mxu0 0.0
        %653 = vmatpush.msra.mxu0 0.0
        %654 = vmatpush.msra.mxu0 0.0
        %655 = vmatpush.msra.mxu0 0.0
        %656 = vmatpush.msra.mxu0 0.0
        %657 = vmatpush.msra.mxu0 0.0
        %658 = vmatpush.msra.mxu0 %v517
        %659 = vmatpush.msra.mxu0 %v513
        %660 = vmatpush.msra.mxu0 %v509
        %661 = vmatpush.msra.mxu0 %v505
        %662 = vmatmul.f32.gmra.mxu0 %v548
        %v663 = vpop.f32.mrf.mxu0
        %v664 = vadd.f32 %v529, %v663
        %665 = vmatmul.f32.gmra.mxu0 %v551
        %v666 = vpop.f32.mrf.mxu0
        %v667 = vadd.f32 %v534, %v666
        %668 = vmatmul.f32.gmra.mxu0 %v554
        %v669 = vpop.f32.mrf.mxu0
        %v670 = vadd.f32 %v539, %v669
        %671 = vmatmul.f32.gmra.mxu0 %v557
        %v672 = vpop.f32.mrf.mxu0
        %v673 = vadd.f32 %v544, %v672
        %674 = vdwg.mxu0
        %675 = vst [vmem:[%s218] sm:$0xff] %v577
        %676 = vst [vmem:[%s218 + $0x8] sm:$0xff] %v606
        %677 = vst [vmem:[%s218 + $0x10] sm:$0xff] %v635
        %678 = vst [vmem:[%s218 + $0x18] sm:$0xff] %v664
        %679 = vst [vmem:[%s218 + $0x20] sm:$0xff] %v580
        %680 = vst [vmem:[%s218 + $0x28] sm:$0xff] %v609
        %681 = vst [vmem:[%s218 + $0x30] sm:$0xff] %v638
        %682 = vst [vmem:[%s218 + $0x38] sm:$0xff] %v667
        %683 = vst [vmem:[%s218 + $0x40] sm:$0xff] %v583
        %684 = vst [vmem:[%s218 + $0x48] sm:$0xff] %v612
        %685 = vst [vmem:[%s218 + $0x50] sm:$0xff] %v641
        %686 = vst [vmem:[%s218 + $0x58] sm:$0xff] %v670
        %687 = vst [vmem:[%s218 + $0x60] sm:$0xff] %v586
        %688 = vst [vmem:[%s218 + $0x68] sm:$0xff] %v615
        %689 = vst [vmem:[%s218 + $0x70] sm:$0xff] %v644
        %690 = vst [vmem:[%s218 + $0x78] sm:$0xff] %v673
        %s691 = sand.u32 %s137, 1
        %s692 = scalar_lea.sflag [#allocation3], %s691
        %s693 = sand.u32 %s137, 1
        %s694 = smul.addr %s693, 128
        %s695 = scalar_lea.vmem [#allocation2], %s694
        // Predicated region
        $region41: #{tpu_custom_call.1} parent=39 // pred_check
          %p696 = pneg %p147
        $region42: #{tpu_custom_call.1} parent=39 // pred_check_branch
          %698 = sbr.rel (%p696) target = $region44
        $region43: #{tpu_custom_call.1} parent=39 // pred_region
          %s699 = smul.u32 4, %s19
          %701 = vsyncadd %s692, 0
          %s702 = smul.addr %s699, 8
          %s703 = scalar_lea.hbm %s5, %s702
          %s704 = sshll.u32 %s695, 4
          %s705 = int_to_ptr.vmem [resolvable:$true] %s704
          %s706 = sshll.u32 %s703, 4
          %s707 = int_to_ptr.hbm [resolvable:$true] %s706
          %712 = dma.vmem_to_hbm [thread:$0]  %s705, 2048, %s707, %s692, 512, 1024, 32
        $region44: #{tpu_custom_call.1} parent=39 // pred_fallthru
          _
      $region40: #{tpu_custom_call.1} parent=5 // pred_fallthru
        _
      %p713 = scmp.le.s32.totalorder 2, %s14
      // Predicated region
      $region45: #{tpu_custom_call.1} parent=5 // pred_check
        %p714 = pneg %p713
      $region46: #{tpu_custom_call.1} parent=5 // pred_check_branch
        %716 = sbr.rel (%p714) target = $region48
      $region47: #{tpu_custom_call.1} parent=5 // pred_region
        %s717 = ssub.s32 %s14, 2
        // Predicated region
        $region49: #{tpu_custom_call.1} parent=47 // pred_check
          %p718 = pneg %p153
        $region50: #{tpu_custom_call.1} parent=47 // pred_check_branch
          %720 = sbr.rel (%p718) target = $region52
        $region51: #{tpu_custom_call.1} parent=47 // pred_region
          %s721 = sand.u32 %s138, 1
          %s722 = scalar_lea.sflag [#allocation3], %s721
          %s723 = sand.u32 %s138, 1
          %s724 = smul.addr %s723, 128
          %s725 = scalar_lea.vmem [#allocation2], %s724
          %727 = dma.done %s722, 2048
        $region52: #{tpu_custom_call.1} parent=47 // pred_fallthru
          _
      $region48: #{tpu_custom_call.1} parent=5 // pred_fallthru
        _
    $region6: #{tpu_custom_call.1} parent=1 // loop_footer
      %s18 = sadd.s32 1, %s14
    $region7: #{tpu_custom_call.1} parent=1 // loop_footer_branch
      %13 = sbr.rel target = $region3
    $region8: #{tpu_custom_call.1} parent=1 // loop_exit
      _
    %728 = vsyncpa [#allocation3], 1
    %s729 = scalar_lea.sflag [#allocation3], 1
    %730 = vsyncpa %s729, 1

</llo_original>
